<compile_context>
chip_gen: v6e
topology: v6e:2x2x1
jax: 0.10.0
libtpu: 0.0.40
codegen_flags: <defaults>
</compile_context>

<pallas_src>
import jax
import jax.numpy as jnp
from jax.experimental import pallas as pl
from jax.experimental.pallas import tpu as pltpu


def _round_up(x: int, m: int) -> int:
    return (x + m - 1) // m * m


def _pick_tile(dim: int, cap: int, unit: int):
    """Return (padded_dim, tile): tile is a multiple of `unit`, tile <= cap, tile divides
    padded_dim, and padding overhead is kept <= ~25% when multiple tiles are needed."""
    d = _round_up(dim, unit)
    if d <= cap:
        return d, d
    t = cap
    while t > unit:
        p = _round_up(d, t)
        if (p - d) * 4 <= d:          # <= 25% padded-FLOP overhead
            return p, t
        t -= unit
    return d, unit


def _working_set_bytes(tm, tn, tk, in_bytes):
    # double-buffered X/W input tiles + double-buffered f32 output tile + bias slab
    return 2 * (tm * tk + tk * tn) * in_bytes + 2 * tm * tn * 4 + 2 * tn * 4


def _linear_kernel(x_ref, w_ref, b_ref, o_ref):
    # x_ref : (tm, tk)  VMEM  -- X tile (compute dtype)
    # w_ref : (tk, tn)  VMEM  -- W^T tile (compute dtype, canonical contraction axes)
    # b_ref : (1,  tn)  VMEM  -- bias slab for this output-column tile (f32)
    # o_ref : (tm, tn)  VMEM  -- f32 output tile, resident across the K grid axis
    k = pl.program_id(2)
    nk = pl.num_programs(2)
    first = k == 0
    last = k == nk - 1

    partial = jnp.dot(x_ref[...], w_ref[...], preferred_element_type=jnp.float32)

    @pl.when(first & last)
    def _():
        o_ref[...] = partial + b_ref[...]

    @pl.when(first & jnp.logical_not(last))
    def _():
        o_ref[...] = partial                      # direct write: no zero-fill + add

    @pl.when(jnp.logical_not(first) & jnp.logical_not(last))
    def _():
        o_ref[...] += partial

    @pl.when(jnp.logical_not(first) & last)
    def _():
        o_ref[...] = o_ref[...] + partial + b_ref[...]


def linear_regression_forward(x, weight, bias, *, tm_max=512, tn_max=512, tk_max=2048,
                              compute_dtype=jnp.bfloat16, allow_fast_path=True):
    """y = x @ weight.T + bias, matching torch.nn.Linear.forward (f32 output)."""
    n, in_dim = x.shape
    out_dim, in_dim_w = weight.shape
    assert in_dim == in_dim_w
    assert bias.shape == (out_dim,)

    # Tiny layers (the original script uses Linear(1, 1)): padding to MXU tiles wastes >100x
    # the FLOPs and launch/pad/slice overhead dominates -> plain XLA is strictly faster.
    if allow_fast_path and in_dim * out_dim <= 128 * 128:
        return (x @ weight.T + bias).astype(jnp.float32)

    in_bytes = jnp.dtype(compute_dtype).itemsize
    sub = 16 if in_bytes < 4 else 8               # sublane packing unit for the row axis

    # Keep the double-buffered working set comfortably under v5e's 16 MiB scoped-VMEM default
    # (also leaves plenty of headroom on v7x's 64 MiB physical VMEM). Shrink K first.
    budget = 14 * 1024 * 1024
    while _working_set_bytes(tm_max, tn_max, tk_max, in_bytes) > budget and tk_max > 512:
        tk_max //= 2
    while _working_set_bytes(tm_max, tn_max, tk_max, in_bytes) > budget and tn_max > 256:
        tn_max //= 2
    while _working_set_bytes(tm_max, tn_max, tk_max, in_bytes) > budget and tm_max > 128:
        tm_max //= 2

    n_pad, tm = _pick_tile(n, tm_max, sub)
    out_pad, tn = _pick_tile(out_dim, tn_max, 128)
    in_pad, tk = _pick_tile(in_dim, tk_max, 128)

    # Megacore: keep >= 2 blocks along a parallel axis; split N (W is the big operand).
    if n_pad // tm == 1 and out_pad // tn == 1 and out_pad >= 256 and out_pad % 256 == 0:
        tn = out_pad // 2

    grid = (n_pad // tm, out_pad // tn, in_pad // tk)

    # One-time pad (zero columns along K are benign) + transpose + cast in the wrapper.
    x_p = x if (n_pad, in_pad) == (n, in_dim) else jnp.pad(
        x, ((0, n_pad - n), (0, in_pad - in_dim)))
    w_t = weight.T                                 # (in_dim, out_dim): canonical contraction
    w_p = w_t if (in_pad, out_pad) == (in_dim, out_dim) else jnp.pad(
        w_t, ((0, in_pad - in_dim), (0, out_pad - out_dim)))
    x_p = x_p.astype(compute_dtype)
    w_p = w_p.astype(compute_dtype)
    b_p = bias if out_pad == out_dim else jnp.pad(bias, (0, out_pad - out_dim))
    b_p = b_p.astype(jnp.float32).reshape(1, out_pad)

    y_p = pl.pallas_call(
        _linear_kernel,
        out_shape=jax.ShapeDtypeStruct((n_pad, out_pad), jnp.float32),
        grid_spec=pltpu.PrefetchScalarGridSpec(
            num_scalar_prefetch=0,
            grid=grid,
            in_specs=[
                pl.BlockSpec((tm, tk), lambda i, j, k: (i, k)),   # X tile
                pl.BlockSpec((tk, tn), lambda i, j, k: (k, j)),   # W^T tile (no XLU transpose)
                pl.BlockSpec((1, tn), lambda i, j, k: (0, j)),    # bias slab (k-independent)
            ],
            out_specs=pl.BlockSpec((tm, tn), lambda i, j, k: (i, j)),
        ),
        compiler_params=pltpu.CompilerParams(
            dimension_semantics=("parallel", "parallel", "arbitrary")),
    )(x_p, w_p, b_p)

    if (n_pad, out_pad) != (n, out_dim):
        y_p = y_p[:n, :out_dim]
    return y_p


if __name__ == "__main__":
    key = jax.random.PRNGKey(0)
    k1, k2, k3, k4, k5, k6, k7, k8, k9 = jax.random.split(key, 9)

    # --- Case 1: shapes implied by the original script (X.reshape(-1, 1), nn.Linear(1, 1)) ---
    n, in_dim, out_dim = 8, 1, 1
    x = jax.random.normal(k1, (n, in_dim), dtype=jnp.float32)
    w = jax.random.uniform(k2, (out_dim, in_dim), dtype=jnp.float32, minval=-1.0, maxval=1.0)
    b = jax.random.uniform(k3, (out_dim,), dtype=jnp.float32, minval=-1.0, maxval=1.0)
    y_ref = x @ w.T + b

    y_fast = jax.block_until_ready(linear_regression_forward(x, w, b))   # XLA fast path
    y_kern = jax.block_until_ready(                                      # forced Pallas path
        linear_regression_forward(x, w, b, allow_fast_path=False, compute_dtype=jnp.float32))
    assert y_fast.shape == (n, out_dim) and y_kern.shape == (n, out_dim)
    assert jnp.allclose(y_fast, y_ref, atol=1e-5, rtol=1e-5)
    assert jnp.allclose(y_kern, y_ref, atol=1e-2, rtol=1e-2)

    # --- Case 2: multi-tile (N, K) grid, bf16 MXU path (default) ---
    n2, in2, out2 = 256, 4096, 1024          # grid (1, 2, 2) with tm=256, tn=512, tk=2048
    x2 = jax.random.normal(k4, (n2, in2), dtype=jnp.float32)
    w2 = jax.random.normal(k5, (out2, in2), dtype=jnp.float32) * 0.02
    b2 = jax.random.normal(k6, (out2,), dtype=jnp.float32)
    y2 = jax.block_until_ready(linear_regression_forward(x2, w2, b2))
    y2_ref = x2 @ w2.T + b2
    assert y2.shape == (n2, out2)
    # bf16 inputs / f32 accumulation: documented loose tolerance vs. the f32 reference.
    assert jnp.allclose(y2, y2_ref, atol=5e-2, rtol=5e-2)

    # --- Case 3: f32 compute path; exercises the megacore N-split (grid (1, 2, 1)) ---
    n3, in3, out3 = 256, 1024, 512
    x3 = jax.random.normal(k7, (n3, in3), dtype=jnp.float32)
    w3 = jax.random.normal(k8, (out3, in3), dtype=jnp.float32) * 0.02
    b3 = jax.random.normal(k9, (out3,), dtype=jnp.float32)
    y3 = jax.block_until_ready(
        linear_regression_forward(x3, w3, b3, compute_dtype=jnp.float32))
    y3_ref = x3 @ w3.T + b3
    assert y3.shape == (n3, out3)
    assert jnp.allclose(y3, y3_ref, atol=1e-2, rtol=1e-2)

    print("KERNEL_OK")
</pallas_src>

<mosaic_0001>
module attributes {stable_mosaic.version = 11 : i64} {
  func.func @_linear_kernel(%arg0: i32, %arg1: i32, %arg2: i32, %arg3: memref<8x128xf32, #tpu.memory_space<vmem>>, %arg4: memref<128x128xf32, #tpu.memory_space<vmem>>, %arg5: memref<1x128xf32, #tpu.memory_space<vmem>>, %arg6: memref<8x128xf32, #tpu.memory_space<vmem>>) attributes {dimension_semantics = [#tpu.dimension_semantics<parallel>, #tpu.dimension_semantics<parallel>, #tpu.dimension_semantics<arbitrary>], iteration_bounds = array<i64: 1, 1, 1>, scalar_prefetch = 0 : i64, scratch_operands = 0 : i64, tpu.core_type = #tpu.core_type<tc>, window_params = [{transform_indices = @transform_0, window_bounds = array<i64: 8, 128>}, {transform_indices = @transform_1, window_bounds = array<i64: 128, 128>}, {transform_indices = @transform_2, window_bounds = array<i64: 1, 128>}, {transform_indices = @transform_3, window_bounds = array<i64: 8, 128>}]} {
    %c0_i32 = arith.constant 0 : i32
    %0 = arith.cmpi eq, %arg2, %c0_i32 : i32
    %c0_i32_0 = arith.constant 0 : i32
    %1 = arith.cmpi eq, %arg2, %c0_i32_0 : i32
    %c0 = arith.constant 0 : index
    %c0_1 = arith.constant 0 : index
    %2 = vector.load %arg3[%c0, %c0_1] : memref<8x128xf32, #tpu.memory_space<vmem>>, vector<8x128xf32>
    %c0_2 = arith.constant 0 : index
    %c0_3 = arith.constant 0 : index
    %3 = vector.load %arg4[%c0_2, %c0_3] : memref<128x128xf32, #tpu.memory_space<vmem>>, vector<128x128xf32>
    %cst = arith.constant dense<0.000000e+00> : vector<8x128xf32>
    %4 = tpu.matmul %2, %3, %cst {dimension_numbers = #tpu.dot_dimension_numbers<[1], [0], [0], [1], [0, 0, 1, 1], [], []>} : vector<8x128xf32>, vector<128x128xf32>, vector<8x128xf32> -> vector<8x128xf32>
    %5 = arith.andi %0, %1 : i1
    %6 = arith.extui %5 : i1 to i32
    %c0_i32_4 = arith.constant 0 : i32
    %7 = arith.cmpi ne, %6, %c0_i32_4 : i32
    scf.if %7 {
      %c0_11 = arith.constant 0 : index
      %c0_12 = arith.constant 0 : index
      %21 = vector.load %arg5[%c0_11, %c0_12] : memref<1x128xf32, #tpu.memory_space<vmem>>, vector<1x128xf32>
      %22 = vector.broadcast %21 : vector<1x128xf32> to vector<8x128xf32>
      %23 = arith.addf %4, %22 : vector<8x128xf32>
      %c0_13 = arith.constant 0 : index
      %c0_14 = arith.constant 0 : index
      %24 = vector.load %arg6[%c0_13, %c0_14] : memref<8x128xf32, #tpu.memory_space<vmem>>, vector<8x128xf32>
      tpu.vector_store %arg6[%c0_13, %c0_14], %23 {strides = array<i32>} : memref<8x128xf32, #tpu.memory_space<vmem>>, vector<8x128xf32>,
    } else {
    }
    %true = arith.constant true
    %8 = arith.xori %1, %true : i1
    %9 = arith.andi %0, %8 : i1
    %10 = arith.extui %9 : i1 to i32
    %c0_i32_5 = arith.constant 0 : i32
    %11 = arith.cmpi ne, %10, %c0_i32_5 : i32
    scf.if %11 {
      %c0_11 = arith.constant 0 : index
      %c0_12 = arith.constant 0 : index
      %21 = vector.load %arg6[%c0_11, %c0_12] : memref<8x128xf32, #tpu.memory_space<vmem>>, vector<8x128xf32>
      tpu.vector_store %arg6[%c0_11, %c0_12], %4 {strides = array<i32>} : memref<8x128xf32, #tpu.memory_space<vmem>>, vector<8x128xf32>,
    } else {
    }
    %true_6 = arith.constant true
    %12 = arith.xori %0, %true_6 : i1
    %true_7 = arith.constant true
    %13 = arith.xori %1, %true_7 : i1
    %14 = arith.andi %12, %13 : i1
    %15 = arith.extui %14 : i1 to i32
    %c0_i32_8 = arith.constant 0 : i32
    %16 = arith.cmpi ne, %15, %c0_i32_8 : i32
    scf.if %16 {
      %c0_11 = arith.constant 0 : index
      %c0_12 = arith.constant 0 : index
      %21 = vector.load %arg6[%c0_11, %c0_12] : memref<8x128xf32, #tpu.memory_space<vmem>>, vector<8x128xf32>
      %22 = arith.addf %21, %4 : vector<8x128xf32>
      %c0_13 = arith.constant 0 : index
      %c0_14 = arith.constant 0 : index
      %23 = vector.load %arg6[%c0_13, %c0_14] : memref<8x128xf32, #tpu.memory_space<vmem>>, vector<8x128xf32>
      tpu.vector_store %arg6[%c0_13, %c0_14], %22 {strides = array<i32>} : memref<8x128xf32, #tpu.memory_space<vmem>>, vector<8x128xf32>,
    } else {
    }
    %true_9 = arith.constant true
    %17 = arith.xori %0, %true_9 : i1
    %18 = arith.andi %17, %1 : i1
    %19 = arith.extui %18 : i1 to i32
    %c0_i32_10 = arith.constant 0 : i32
    %20 = arith.cmpi ne, %19, %c0_i32_10 : i32
    scf.if %20 {
      %c0_11 = arith.constant 0 : index
      %c0_12 = arith.constant 0 : index
      %21 = vector.load %arg6[%c0_11, %c0_12] : memref<8x128xf32, #tpu.memory_space<vmem>>, vector<8x128xf32>
      %22 = arith.addf %21, %4 : vector<8x128xf32>
      %c0_13 = arith.constant 0 : index
      %c0_14 = arith.constant 0 : index
      %23 = vector.load %arg5[%c0_13, %c0_14] : memref<1x128xf32, #tpu.memory_space<vmem>>, vector<1x128xf32>
      %24 = vector.broadcast %23 : vector<1x128xf32> to vector<8x128xf32>
      %25 = arith.addf %22, %24 : vector<8x128xf32>
      %c0_15 = arith.constant 0 : index
      %c0_16 = arith.constant 0 : index
      %26 = vector.load %arg6[%c0_15, %c0_16] : memref<8x128xf32, #tpu.memory_space<vmem>>, vector<8x128xf32>
      tpu.vector_store %arg6[%c0_15, %c0_16], %25 {strides = array<i32>} : memref<8x128xf32, #tpu.memory_space<vmem>>, vector<8x128xf32>,
    } else {
    }
    return
  }
  func.func @transform_0(%arg0: i32, %arg1: i32, %arg2: i32) -> (i32, i32) {
    %c0_i32 = arith.constant 0 : i32
    return %arg0, %arg2 : i32, i32
  }
  func.func @transform_1(%arg0: i32, %arg1: i32, %arg2: i32) -> (i32, i32) {
    %c0_i32 = arith.constant 0 : i32
    return %arg2, %arg1 : i32, i32
  }
  func.func @transform_2(%arg0: i32, %arg1: i32, %arg2: i32) -> (i32, i32) {
    %c0_i32 = arith.constant 0 : i32
    %c0_i32_0 = arith.constant 0 : i32
    return %c0_i32, %arg1 : i32, i32
  }
  func.func @transform_3(%arg0: i32, %arg1: i32, %arg2: i32) -> (i32, i32) {
    %c0_i32 = arith.constant 0 : i32
    return %arg0, %arg1 : i32, i32
  }
}

</mosaic_0001>

<llo_original>
// kernel: tpu_custom_call.1
$region0: #{tpu_custom_call.1}
  #allocation0 [shape = 'u32[]', space=smem, size = 0x4, offset = 0x4, fixed_abs, tag = 'smem constant byte address 0x4 - core index']
  #allocation1 [shape = 'u32[144,128]{1,0:T(1,128)}', space=vmem, size = 0x12000, scoped, tag = 'internal scratch']
  %s0 = inlined_call_operand.hbm [shape: f32[8,128], index: 0, kind: input, shape index: {}]
  %s1 = inlined_call_operand.hbm [shape: f32[128,128], index: 1, kind: input, shape index: {}]
  %s2 = inlined_call_operand.vmem [shape: f32[1,128], index: 2, kind: input, shape index: {}]
  %s3 = inlined_call_operand.hbm [shape: f32[8,128], index: 3, kind: output, shape index: {}]
  %s4 = sld [smem:[#allocation0]]
  $region46: #{tpu_custom_call.1} parent=0
    _
  %s6 = ssub.s32 1, %s4
  %s7 = scalar_select 0, %s6, %s4
  $region1: #{tpu_custom_call.1} parent=0
    #allocation2 [shape = 'u8[4096]{0}', space=vmem, size = 0x1000, scoped, tag = 'input window, operand 0, single buffered']
    #allocation3 [shape = 's32[1]{0}', space=sflag, size = 0x4, scoped, tag = 'scoped memory for tpu_custom_call.1']
    #allocation4 [shape = 's32[1]{0}', space=sflag, size = 0x4, scoped, tag = 'scoped memory for tpu_custom_call.1']
    #allocation5 [shape = 'u8[65536]{0}', space=vmem, size = 0x10000, scoped, tag = 'input window, operand 1, single buffered']
    #allocation6 [shape = 's32[1]{0}', space=sflag, size = 0x4, scoped, tag = 'scoped memory for tpu_custom_call.1']
    #allocation7 [shape = 'u8[4096]{0}', space=vmem, size = 0x1000, scoped, tag = 'output window, operand 0, single buffered']
    %8 = vsyncpa [#allocation3], 0
    %9 = vsyncpa [#allocation6], 0
    %10 = vsyncpa [#allocation4], 0
    // Predicated region
    $region2: #{tpu_custom_call.1} parent=1 // pred_check
      _
    $region3: #{tpu_custom_call.1} parent=1 // pred_check_branch
      %12 = sbr.rel (0) target = $region5
    $region4: #{tpu_custom_call.1} parent=1 // pred_region
      %s14 = ssub.s32 128, 128
      %15 = vsyncadd [#allocation3], %s14
      %s17 = sshll.u32 [#allocation2], 4
      %s18 = int_to_ptr.vmem [resolvable:$true] %s17
      %20 = dma.hbm_to_vmem [thread:$0]  %s0, 128, %s18, [#allocation3]
    $region5: #{tpu_custom_call.1} parent=1 // pred_fallthru
      _
    // Predicated region
    $region6: #{tpu_custom_call.1} parent=1 // pred_check
      _
    $region7: #{tpu_custom_call.1} parent=1 // pred_check_branch
      %22 = sbr.rel (0) target = $region9
    $region8: #{tpu_custom_call.1} parent=1 // pred_region
      %s24 = ssub.s32 2048, 2048
      %25 = vsyncadd [#allocation6], %s24
      %s26 = sshll.u32 [#allocation5], 4
      %s27 = int_to_ptr.vmem [resolvable:$true] %s26
      %32 = dma.hbm_to_vmem [thread:$0]  %s1, 2048, %s27, [#allocation6], 128, 128, 8
    $region9: #{tpu_custom_call.1} parent=1 // pred_fallthru
      _
    // Predicated region
    $region10: #{tpu_custom_call.1} parent=1 // pred_check
      _
    $region11: #{tpu_custom_call.1} parent=1 // pred_check_branch
      %34 = sbr.rel (0) target = $region13
    $region12: #{tpu_custom_call.1} parent=1 // pred_region
      _
    $region13: #{tpu_custom_call.1} parent=1 // pred_fallthru
      _
    // Predicated region
    $region14: #{tpu_custom_call.1} parent=1 // pred_check
      _
    $region15: #{tpu_custom_call.1} parent=1 // pred_check_branch
      %36 = sbr.rel (0) target = $region17
    $region16: #{tpu_custom_call.1} parent=1 // pred_region
      %37 = dma.done [#allocation3], 128
    $region17: #{tpu_custom_call.1} parent=1 // pred_fallthru
      _
    // Predicated region
    $region18: #{tpu_custom_call.1} parent=1 // pred_check
      _
    $region19: #{tpu_custom_call.1} parent=1 // pred_check_branch
      %39 = sbr.rel (0) target = $region21
    $region20: #{tpu_custom_call.1} parent=1 // pred_region
      %40 = dma.done [#allocation6], 2048
    $region21: #{tpu_custom_call.1} parent=1 // pred_fallthru
      _
    %p41 = scmp.eq.s32.totalorder 0, 0
    %v42 = vld [vmem:[#allocation2] sm:$0xff]
    %v43 = vld [vmem:[#allocation5] sm:$0xff]
    %v44 = vld [vmem:[#allocation5 + $0x8] sm:$0xff]
    %v45 = vld [vmem:[#allocation5 + $0x10] sm:$0xff]
    %v46 = vld [vmem:[#allocation5 + $0x18] sm:$0xff]
    %v47 = vld [vmem:[#allocation5 + $0x20] sm:$0xff]
    %v48 = vld [vmem:[#allocation5 + $0x28] sm:$0xff]
    %v49 = vld [vmem:[#allocation5 + $0x30] sm:$0xff]
    %v50 = vld [vmem:[#allocation5 + $0x38] sm:$0xff]
    %v51 = vld [vmem:[#allocation5 + $0x40] sm:$0xff]
    %v52 = vld [vmem:[#allocation5 + $0x48] sm:$0xff]
    %v53 = vld [vmem:[#allocation5 + $0x50] sm:$0xff]
    %v54 = vld [vmem:[#allocation5 + $0x58] sm:$0xff]
    %v55 = vld [vmem:[#allocation5 + $0x60] sm:$0xff]
    %v56 = vld [vmem:[#allocation5 + $0x68] sm:$0xff]
    %v57 = vld [vmem:[#allocation5 + $0x70] sm:$0xff]
    %v58 = vld [vmem:[#allocation5 + $0x78] sm:$0xff]
    %59 = vmatprep.subr.mxu0 0.0
    %60 = vmatpush1.msra.mxu0 %v58
    %61 = vmatprep.subr.mxu0 0.0
    %62 = vmatpush1.msra.mxu0 %v57
    %63 = vmatprep.subr.mxu0 0.0
    %64 = vmatpush1.msra.mxu0 %v56
    %65 = vmatprep.subr.mxu0 0.0
    %66 = vmatpush1.msra.mxu0 %v55
    %67 = vmatprep.subr.mxu0 0.0
    %68 = vmatpush1.msra.mxu0 %v54
    %69 = vmatprep.subr.mxu0 0.0
    %70 = vmatpush1.msra.mxu0 %v53
    %71 = vmatprep.subr.mxu0 0.0
    %72 = vmatpush1.msra.mxu0 %v52
    %73 = vmatprep.subr.mxu0 0.0
    %74 = vmatpush1.msra.mxu0 %v51
    %75 = vmatprep.subr.mxu0 0.0
    %76 = vmatpush1.msra.mxu0 %v50
    %77 = vmatprep.subr.mxu0 0.0
    %78 = vmatpush1.msra.mxu0 %v49
    %79 = vmatprep.subr.mxu0 0.0
    %80 = vmatpush1.msra.mxu0 %v48
    %81 = vmatprep.subr.mxu0 0.0
    %82 = vmatpush1.msra.mxu0 %v47
    %83 = vmatprep.subr.mxu0 0.0
    %84 = vmatpush1.msra.mxu0 %v46
    %85 = vmatprep.subr.mxu0 0.0
    %86 = vmatpush1.msra.mxu0 %v45
    %87 = vmatprep.subr.mxu0 0.0
    %88 = vmatpush1.msra.mxu0 %v44
    %89 = vmatprep.subr.mxu0 0.0
    %90 = vmatpush1.msra.mxu0 %v43
    %91 = vmatprep.subr.mxu0 0.0
    %92 = vmatpush2.msra.mxu0 0.0
    %93 = vmatprep.subr.mxu0 0.0
    %94 = vmatpush2.msra.mxu0 0.0
    %95 = vmatprep.subr.mxu0 0.0
    %96 = vmatpush2.msra.mxu0 0.0
    %97 = vmatprep.subr.mxu0 0.0
    %98 = vmatpush2.msra.mxu0 0.0
    %99 = vmatprep.subr.mxu0 0.0
    %100 = vmatpush2.msra.mxu0 0.0
    %101 = vmatprep.subr.mxu0 0.0
    %102 = vmatpush2.msra.mxu0 0.0
    %103 = vmatprep.subr.mxu0 0.0
    %104 = vmatpush2.msra.mxu0 0.0
    %105 = vmatprep.subr.mxu0 0.0
    %106 = vmatpush2.msra.mxu0 0.0
    %107 = vmatprep.subr.mxu0 0.0
    %108 = vmatpush2.msra.mxu0 0.0
    %109 = vmatprep.subr.mxu0 0.0
    %110 = vmatpush2.msra.mxu0 0.0
    %111 = vmatprep.subr.mxu0 0.0
    %112 = vmatpush2.msra.mxu0 0.0
    %113 = vmatprep.subr.mxu0 0.0
    %114 = vmatpush2.msra.mxu0 0.0
    %115 = vmatprep.subr.mxu0 0.0
    %116 = vmatpush2.msra.mxu0 0.0
    %117 = vmatprep.subr.mxu0 0.0
    %118 = vmatpush2.msra.mxu0 0.0
    %119 = vmatprep.subr.mxu0 0.0
    %120 = vmatpush2.msra.mxu0 0.0
    %121 = vmatprep.subr.mxu0 0.0
    %122 = vmatpush2.msra.mxu0 0.0
    %123 = vmatprep.mubr.f32.mxu0 0.0
    %124 = vmatmul.mubr.f32.gmra.mxu0 %v42
    %v125 = vpop.f32.mrf.mxu0
    %v126 = vadd.f32 0.0, %v125
    %v127 = vpop.f32.mrf.mxu0
    %128 = vdwg.mxu0
    // Predicated region
    $region22: #{tpu_custom_call.1} parent=1 // pred_check
      %p129 = pneg %p41
    $region23: #{tpu_custom_call.1} parent=1 // pred_check_branch
      %131 = sbr.rel (%p129) target = $region25
    $region24: #{tpu_custom_call.1} parent=1 // pred_region
      %v132 = vld [vmem:[%s2] sm:$0x1]
      %v134 = vlaneseq
      %v135 = vshrl.u32 %v134, 7
      %v136 = vsub.s32 0, %v135
      %v137 = vrot.slane %v132, %v136
      %v139 = vadd.f32 %v126, %v137
      %140 = vst [vmem:[#allocation7] sm:$0xff] %v139
    $region25: #{tpu_custom_call.1} parent=1 // pred_fallthru
      _
    %p141 = scmp.ne.s32.totalorder 0, 0
    %p142 = pnand %p41, %p141
    %p143 = pneg %p142
    // Predicated region
    $region26: #{tpu_custom_call.1} parent=1 // pred_check
      _
    $region27: #{tpu_custom_call.1} parent=1 // pred_check_branch
      %145 = sbr.rel (%p142) target = $region29
    $region28: #{tpu_custom_call.1} parent=1 // pred_region
      %146 = vst [vmem:[#allocation7] sm:$0xff] %v126
    $region29: #{tpu_custom_call.1} parent=1 // pred_fallthru
      _
    // Predicated region
    $region30: #{tpu_custom_call.1} parent=1 // pred_check
      %p147 = pneg %p141
    $region31: #{tpu_custom_call.1} parent=1 // pred_check_branch
      %149 = sbr.rel (%p147) target = $region33
    $region32: #{tpu_custom_call.1} parent=1 // pred_region
      %v150 = vld [vmem:[#allocation7] sm:$0xff]
      %v151 = vadd.f32 %v150, %v126
      %152 = vst [vmem:[#allocation7] sm:$0xff] %v151
    $region33: #{tpu_custom_call.1} parent=1 // pred_fallthru
      _
    // Predicated region
    $region34: #{tpu_custom_call.1} parent=1 // pred_check
      _
    $region35: #{tpu_custom_call.1} parent=1 // pred_check_branch
      %154 = sbr.rel (%p142) target = $region37
    $region36: #{tpu_custom_call.1} parent=1 // pred_region
      %v155 = vld [vmem:[#allocation7] sm:$0xff]
      %v156 = vadd.f32 %v155, %v126
      %v157 = vld [vmem:[%s2] sm:$0x1]
      %v159 = vlaneseq
      %v160 = vshrl.u32 %v159, 7
      %v161 = vsub.s32 0, %v160
      %v162 = vrot.slane %v157, %v161
      %v164 = vadd.f32 %v156, %v162
      %165 = vst [vmem:[#allocation7] sm:$0xff] %v164
    $region37: #{tpu_custom_call.1} parent=1 // pred_fallthru
      _
    // Predicated region
    $region38: #{tpu_custom_call.1} parent=1 // pred_check
      _
    $region39: #{tpu_custom_call.1} parent=1 // pred_check_branch
      %167 = sbr.rel (0) target = $region41
    $region40: #{tpu_custom_call.1} parent=1 // pred_region
      %s169 = ssub.s32 128, 128
      %170 = vsyncadd [#allocation4], %s169
      %s172 = sshll.u32 [#allocation7], 4
      %s173 = int_to_ptr.vmem [resolvable:$true] %s172
      %175 = dma.vmem_to_hbm [thread:$0]  %s173, 128, %s3, [#allocation4]
    $region41: #{tpu_custom_call.1} parent=1 // pred_fallthru
      _
    // Predicated region
    $region42: #{tpu_custom_call.1} parent=1 // pred_check
      _
    $region43: #{tpu_custom_call.1} parent=1 // pred_check_branch
      %177 = sbr.rel (0) target = $region45
    $region44: #{tpu_custom_call.1} parent=1 // pred_region
      %178 = dma.done [#allocation4], 128
    $region45: #{tpu_custom_call.1} parent=1 // pred_fallthru
      _
    %179 = vsyncpa [#allocation3], 1
    %180 = vsyncpa [#allocation6], 1
    %181 = vsyncpa [#allocation4], 1

</llo_original>
